<compile_context>
chip_gen: v6e
topology: v6e:2x2x1
jax: 0.10.0
libtpu: 0.0.40
codegen_flags: <defaults>
</compile_context>

<pallas_src>
import jax
import jax.numpy as jnp
from jax import lax
from jax.experimental import pallas as pl
from jax.experimental.pallas import tpu as pltpu


def _sigmoid(x):
    # Exact logistic via a single transcendental: sigmoid(x) = 0.5*tanh(0.5x)+0.5
    return 0.5 * jnp.tanh(0.5 * x) + 0.5


# --------------------------------------------------------------------------
# Kernel 1: batched input projection for both directions (throughput-bound,
# row-tiled, fully parallel grid).
# --------------------------------------------------------------------------
def _blstm_input_proj_kernel(x_ref, wf_ref, bf_ref, wb_ref, bb_ref,
                             gf_ref, gb_ref):
    x = x_ref[...]
    gf_ref[...] = (jnp.dot(x, wf_ref[...], preferred_element_type=jnp.float32)
                   + bf_ref[...]).astype(gf_ref.dtype)
    gb_ref[...] = (jnp.dot(x, wb_ref[...], preferred_element_type=jnp.float32)
                   + bb_ref[...]).astype(gb_ref.dtype)


# --------------------------------------------------------------------------
# Kernel 2: merged bidirectional recurrence, T-chunked over the grid.
#   gf_ref : (Tc*Bp, 4H)  gates for forward chunk  n
#   gb_ref : (Tc*Bp, 4H)  gates for backward chunk nc-1-n
#   h0/c0  : (2, Bp, H)   initial states (fwd=0, bwd=1)
#   whh_*  : (H, 4H)      recurrent weights
#   hf/hb  : (Tc*Bp, H)   per-direction hidden-state outputs
#   h_state/c_state : (2, Bp, H) VMEM scratch carrying state across chunks
# --------------------------------------------------------------------------
def _blstm_recurrence_kernel(gf_ref, gb_ref, h0_ref, c0_ref,
                             whhf_ref, whhb_ref,
                             hf_ref, hb_ref,
                             h_state, c_state):
    Bp = h0_ref.shape[1]
    H = h0_ref.shape[2]
    Tc = gf_ref.shape[0] // Bp

    @pl.when(pl.program_id(0) == 0)
    def _():
        h_state[...] = h0_ref[...]
        c_state[...] = c0_ref[...]

    whh_f = whhf_ref[...]
    whh_b = whhb_ref[...]
    w_dtype = whh_f.dtype

    def gate_update(gates, c):
        # gates: (Bp, 4H) f32, packed in PyTorch order [i | f | g | o]
        i = _sigmoid(gates[:, 0 * H:1 * H])
        f = _sigmoid(gates[:, 1 * H:2 * H])
        g = jnp.tanh(gates[:, 2 * H:3 * H])
        o = _sigmoid(gates[:, 3 * H:4 * H])
        c_new = f * c + i * g
        h_new = o * jnp.tanh(c_new)
        return h_new, c_new

    def body(t, carry):
        hf, cf, hb, cb = carry
        tb = Tc - 1 - t                       # backward walks the chunk in reverse
        rf = pl.multiple_of(t * Bp, Bp)       # sublane-aligned row starts
        rb = pl.multiple_of(tb * Bp, Bp)
        gates_f = (gf_ref[pl.ds(rf, Bp), :].astype(jnp.float32)
                   + jnp.dot(hf.astype(w_dtype), whh_f,
                             preferred_element_type=jnp.float32))
        gates_b = (gb_ref[pl.ds(rb, Bp), :].astype(jnp.float32)
                   + jnp.dot(hb.astype(w_dtype), whh_b,
                             preferred_element_type=jnp.float32))
        hf, cf = gate_update(gates_f, cf)
        hb, cb = gate_update(gates_b, cb)
        hf_ref[pl.ds(rf, Bp), :] = hf.astype(hf_ref.dtype)
        hb_ref[pl.ds(rb, Bp), :] = hb.astype(hb_ref.dtype)
        return hf, cf, hb, cb

    init = (h_state[0], c_state[0], h_state[1], c_state[1])
    # Tc is small by construction (wrapper caps it), so unrolling is cheap and
    # gives the LLO scheduler full visibility of both interleaved chains.
    hf, cf, hb, cb = lax.fori_loop(0, Tc, body, init, unroll=True)

    h_state[0] = hf
    c_state[0] = cf
    h_state[1] = hb
    c_state[1] = cb


def _pick_chunk(T, target):
    for d in range(min(target, T), 0, -1):
        if T % d == 0:
            return d
    return 1


def blstm_forward(x, h0, c0, params, *, t_chunk=4, matmul_dtype=jnp.float32):
    """x: (T, B, D_in), h0/c0: (2, B, H) -> (T, B, D_out)."""
    f32 = jnp.float32
    T, B, D_in = x.shape
    H = params["whh_f"].shape[0]

    Bp = ((B + 7) // 8) * 8                   # pad batch to a full sublane
    Tc = _pick_chunk(T, t_chunk)              # per-grid-step time chunk
    nc = T // Tc

    # ---- batch padding (pad rows are independent garbage; sliced off later)
    xp = jnp.zeros((T, Bp, D_in), f32).at[:, :B, :].set(x)
    h0p = jnp.zeros((2, Bp, H), f32).at[:, :B, :].set(h0)
    c0p = jnp.zeros((2, Bp, H), f32).at[:, :B, :].set(c0)

    x2d = xp.reshape(T * Bp, D_in).astype(matmul_dtype)
    wih_f = params["wih_f"].astype(matmul_dtype)
    wih_b = params["wih_b"].astype(matmul_dtype)
    whh_f = params["whh_f"].astype(matmul_dtype)
    whh_b = params["whh_b"].astype(matmul_dtype)
    b_f = params["b_f"].astype(f32)
    b_b = params["b_b"].astype(f32)

    # ---- Kernel 1: input projections (row-tiled, parallel grid) -------------
    gf, gb = pl.pallas_call(
        _blstm_input_proj_kernel,
        out_shape=(jax.ShapeDtypeStruct((T * Bp, 4 * H), matmul_dtype),
                   jax.ShapeDtypeStruct((T * Bp, 4 * H), matmul_dtype)),
        grid=(nc,),
        in_specs=[
            pl.BlockSpec((Tc * Bp, D_in), lambda i: (i, 0)),
            pl.BlockSpec((D_in, 4 * H), lambda i: (0, 0)),
            pl.BlockSpec((1, 4 * H), lambda i: (0, 0)),
            pl.BlockSpec((D_in, 4 * H), lambda i: (0, 0)),
            pl.BlockSpec((1, 4 * H), lambda i: (0, 0)),
        ],
        out_specs=(pl.BlockSpec((Tc * Bp, 4 * H), lambda i: (i, 0)),
                   pl.BlockSpec((Tc * Bp, 4 * H), lambda i: (i, 0))),
        compiler_params=pltpu.CompilerParams(
            dimension_semantics=("parallel",)),
    )(x2d, wih_f, b_f, wih_b, b_b)

    # ---- Kernel 2: chunked bidirectional recurrence -------------------------
    itemsize = jnp.dtype(matmul_dtype).itemsize
    resident = (
        2 * 2 * Tc * Bp * 4 * H * itemsize     # double-buffered gate chunks (2 dirs)
        + 2 * 2 * Tc * Bp * H * itemsize       # double-buffered hidden-state outputs
        + 2 * H * 4 * H * itemsize             # recurrent weights
        + 2 * 2 * Bp * H * 4                   # h0 / c0
        + 2 * 2 * Bp * H * 4                   # carried-state scratch
    )
    vmem_limit = min(int(4 * resident) + (4 << 20), 128 << 20)

    hs_f, hs_b = pl.pallas_call(
        _blstm_recurrence_kernel,
        out_shape=(jax.ShapeDtypeStruct((T * Bp, H), matmul_dtype),
                   jax.ShapeDtypeStruct((T * Bp, H), matmul_dtype)),
        grid=(nc,),
        in_specs=[
            pl.BlockSpec((Tc * Bp, 4 * H), lambda n: (n, 0)),            # fwd gates
            pl.BlockSpec((Tc * Bp, 4 * H), lambda n: (nc - 1 - n, 0)),   # bwd gates
            pl.BlockSpec((2, Bp, H), lambda n: (0, 0, 0)),               # h0
            pl.BlockSpec((2, Bp, H), lambda n: (0, 0, 0)),               # c0
            pl.BlockSpec((H, 4 * H), lambda n: (0, 0)),                  # whh_f
            pl.BlockSpec((H, 4 * H), lambda n: (0, 0)),                  # whh_b
        ],
        out_specs=(pl.BlockSpec((Tc * Bp, H), lambda n: (n, 0)),
                   pl.BlockSpec((Tc * Bp, H), lambda n: (nc - 1 - n, 0))),
        scratch_shapes=[pltpu.VMEM((2, Bp, H), jnp.float32),   # h state (fwd, bwd)
                        pltpu.VMEM((2, Bp, H), jnp.float32)],  # c state (fwd, bwd)
        compiler_params=pltpu.CompilerParams(
            dimension_semantics=("arbitrary",),
            vmem_limit_bytes=vmem_limit),
    )(gf, gb, h0p, c0p, whh_f, whh_b)

    # ---- Tiny output head in XLA on unpadded states (avoids 16x padded
    #      lane writes from the kernel; the slice fuses into the matmul).
    hs_f = hs_f.reshape(T, Bp, H)[:, :B, :].astype(f32)
    hs_b = hs_b.reshape(T, Bp, H)[:, :B, :].astype(f32)
    out = (hs_f @ params["wout"][:H] + hs_b @ params["wout"][H:]
           + params["bout"])
    return out


def blstm_reference(x, h0, c0, params):
    """Pure-JAX reference of the same math (for a correctness check)."""
    H = params["whh_f"].shape[0]

    def cell(carry, x_t, wih, whh, b):
        h, c = carry
        gates = x_t @ wih + h @ whh + b
        i = jax.nn.sigmoid(gates[:, :H])
        f = jax.nn.sigmoid(gates[:, H:2 * H])
        g = jnp.tanh(gates[:, 2 * H:3 * H])
        o = jax.nn.sigmoid(gates[:, 3 * H:])
        c = f * c + i * g
        h = o * jnp.tanh(c)
        return (h, c), h

    _, hf = jax.lax.scan(
        lambda cr, xt: cell(cr, xt, params["wih_f"], params["whh_f"], params["b_f"]),
        (h0[0], c0[0]), x)
    _, hb = jax.lax.scan(
        lambda cr, xt: cell(cr, xt, params["wih_b"], params["whh_b"], params["b_b"]),
        (h0[1], c0[1]), x[::-1])
    hb = hb[::-1]
    hcat = jnp.concatenate([hf, hb], axis=-1)          # (T, B, 2H)
    return hcat @ params["wout"] + params["bout"]      # (T, B, D_out)


if __name__ == "__main__":
    # Small shapes consistent with the module: D_in=16, H=32, D_out=8,
    # seq len T=8, batch B=2, bidirectional single layer.
    T, B, D_in, H, D_out = 8, 2, 16, 32, 8

    key = jax.random.PRNGKey(0)
    ks = jax.random.split(key, 9)
    bound = 1.0 / jnp.sqrt(jnp.float32(H))  # PyTorch-style uniform(-1/sqrt(H), 1/sqrt(H))

    def u(k, shape):
        return jax.random.uniform(k, shape, jnp.float32, -bound, bound)

    params = dict(
        # weight_ih_l0 (4H, D_in) stored transposed; bias = b_ih + b_hh folded.
        wih_f=u(ks[0], (D_in, 4 * H)),
        whh_f=u(ks[1], (H, 4 * H)),
        b_f=u(ks[2], (1, 4 * H)),
        wih_b=u(ks[3], (D_in, 4 * H)),
        whh_b=u(ks[4], (H, 4 * H)),
        b_b=u(ks[5], (1, 4 * H)),
        # hidden2out: Linear(2H, D_out) weight stored transposed (2H, D_out).
        wout=u(ks[6], (2 * H, D_out)),
        bout=u(ks[7], (1, D_out)),
    )

    x = jax.random.normal(ks[8], (T, B, D_in), jnp.float32)
    h0 = jnp.zeros((2, B, H), jnp.float32)   # init_hidden() zeros
    c0 = jnp.zeros((2, B, H), jnp.float32)

    ref = blstm_reference(x, h0, c0, params)

    # f32 path (exercises the chunked grid: T=8 / Tc=4 -> 2 grid steps with
    # cross-chunk state carry).
    out = blstm_forward(x, h0, c0, params, t_chunk=4, matmul_dtype=jnp.float32)
    jax.block_until_ready(out)
    assert out.shape == (T, B, D_out)
    assert jnp.allclose(out, ref, atol=1e-4, rtol=1e-4), "f32 mismatch vs reference"

    # bf16 MXU / bf16 gate+state storage path (the v6e/v7x production setting);
    # elementwise gate math stays f32.
    out_bf16 = blstm_forward(x, h0, c0, params, t_chunk=4,
                             matmul_dtype=jnp.bfloat16)
    jax.block_until_ready(out_bf16)
    assert jnp.allclose(out_bf16, ref, atol=5e-2, rtol=5e-2), "bf16 mismatch vs reference"

    print("KERNEL_OK")
</pallas_src>

<mosaic_0001>
module attributes {stable_mosaic.version = 11 : i64} {
  func.func @_blstm_input_proj_kernel(%arg0: i32, %arg1: memref<32x16xf32, #tpu.memory_space<vmem>>, %arg2: memref<16x128xf32, #tpu.memory_space<vmem>>, %arg3: memref<1x128xf32, #tpu.memory_space<vmem>>, %arg4: memref<16x128xf32, #tpu.memory_space<vmem>>, %arg5: memref<1x128xf32, #tpu.memory_space<vmem>>, %arg6: memref<32x128xf32, #tpu.memory_space<vmem>>, %arg7: memref<32x128xf32, #tpu.memory_space<vmem>>) attributes {dimension_semantics = [#tpu.dimension_semantics<parallel>], iteration_bounds = array<i64: 2>, scalar_prefetch = 0 : i64, scratch_operands = 0 : i64, tpu.core_type = #tpu.core_type<tc>, window_params = [{transform_indices = @transform_0, window_bounds = array<i64: 32, 16>}, {pipeline_mode = #tpu.pipeline_mode<synchronous>, transform_indices = @transform_1, window_bounds = array<i64: 16, 128>}, {pipeline_mode = #tpu.pipeline_mode<synchronous>, transform_indices = @transform_2, window_bounds = array<i64: 1, 128>}, {pipeline_mode = #tpu.pipeline_mode<synchronous>, transform_indices = @transform_3, window_bounds = array<i64: 16, 128>}, {pipeline_mode = #tpu.pipeline_mode<synchronous>, transform_indices = @transform_4, window_bounds = array<i64: 1, 128>}, {transform_indices = @transform_5, window_bounds = array<i64: 32, 128>}, {transform_indices = @transform_6, window_bounds = array<i64: 32, 128>}]} {
    %c0 = arith.constant 0 : index
    %c0_0 = arith.constant 0 : index
    %0 = vector.load %arg1[%c0, %c0_0] : memref<32x16xf32, #tpu.memory_space<vmem>>, vector<32x16xf32>
    %c0_1 = arith.constant 0 : index
    %c0_2 = arith.constant 0 : index
    %1 = vector.load %arg2[%c0_1, %c0_2] : memref<16x128xf32, #tpu.memory_space<vmem>>, vector<16x128xf32>
    %cst = arith.constant dense<0.000000e+00> : vector<32x128xf32>
    %2 = tpu.matmul %0, %1, %cst {dimension_numbers = #tpu.dot_dimension_numbers<[1], [0], [0], [1], [0, 0, 1, 1], [], []>} : vector<32x16xf32>, vector<16x128xf32>, vector<32x128xf32> -> vector<32x128xf32>
    %c0_3 = arith.constant 0 : index
    %c0_4 = arith.constant 0 : index
    %3 = vector.load %arg3[%c0_3, %c0_4] : memref<1x128xf32, #tpu.memory_space<vmem>>, vector<1x128xf32>
    %4 = vector.broadcast %3 : vector<1x128xf32> to vector<32x128xf32>
    %5 = arith.addf %2, %4 : vector<32x128xf32>
    %c0_5 = arith.constant 0 : index
    %c0_6 = arith.constant 0 : index
    %6 = vector.load %arg6[%c0_5, %c0_6] : memref<32x128xf32, #tpu.memory_space<vmem>>, vector<32x128xf32>
    tpu.vector_store %arg6[%c0_5, %c0_6], %5 {strides = array<i32>} : memref<32x128xf32, #tpu.memory_space<vmem>>, vector<32x128xf32>,
    %c0_7 = arith.constant 0 : index
    %c0_8 = arith.constant 0 : index
    %7 = vector.load %arg4[%c0_7, %c0_8] : memref<16x128xf32, #tpu.memory_space<vmem>>, vector<16x128xf32>
    %cst_9 = arith.constant dense<0.000000e+00> : vector<32x128xf32>
    %8 = tpu.matmul %0, %7, %cst_9 {dimension_numbers = #tpu.dot_dimension_numbers<[1], [0], [0], [1], [0, 0, 1, 1], [], []>} : vector<32x16xf32>, vector<16x128xf32>, vector<32x128xf32> -> vector<32x128xf32>
    %c0_10 = arith.constant 0 : index
    %c0_11 = arith.constant 0 : index
    %9 = vector.load %arg5[%c0_10, %c0_11] : memref<1x128xf32, #tpu.memory_space<vmem>>, vector<1x128xf32>
    %10 = vector.broadcast %9 : vector<1x128xf32> to vector<32x128xf32>
    %11 = arith.addf %8, %10 : vector<32x128xf32>
    %c0_12 = arith.constant 0 : index
    %c0_13 = arith.constant 0 : index
    %12 = vector.load %arg7[%c0_12, %c0_13] : memref<32x128xf32, #tpu.memory_space<vmem>>, vector<32x128xf32>
    tpu.vector_store %arg7[%c0_12, %c0_13], %11 {strides = array<i32>} : memref<32x128xf32, #tpu.memory_space<vmem>>, vector<32x128xf32>,
    return
  }
  func.func @transform_0(%arg0: i32) -> (i32, i32) {
    %c0_i32 = arith.constant 0 : i32
    %c0_i32_0 = arith.constant 0 : i32
    return %arg0, %c0_i32 : i32, i32
  }
  func.func @transform_1(%arg0: i32) -> (i32, i32) {
    %c0_i32 = arith.constant 0 : i32
    %c0_i32_0 = arith.constant 0 : i32
    %c0_i32_1 = arith.constant 0 : i32
    return %c0_i32, %c0_i32_0 : i32, i32
  }
  func.func @transform_2(%arg0: i32) -> (i32, i32) {
    %c0_i32 = arith.constant 0 : i32
    %c0_i32_0 = arith.constant 0 : i32
    %c0_i32_1 = arith.constant 0 : i32
    return %c0_i32, %c0_i32_0 : i32, i32
  }
  func.func @transform_3(%arg0: i32) -> (i32, i32) {
    %c0_i32 = arith.constant 0 : i32
    %c0_i32_0 = arith.constant 0 : i32
    %c0_i32_1 = arith.constant 0 : i32
    return %c0_i32, %c0_i32_0 : i32, i32
  }
  func.func @transform_4(%arg0: i32) -> (i32, i32) {
    %c0_i32 = arith.constant 0 : i32
    %c0_i32_0 = arith.constant 0 : i32
    %c0_i32_1 = arith.constant 0 : i32
    return %c0_i32, %c0_i32_0 : i32, i32
  }
  func.func @transform_5(%arg0: i32) -> (i32, i32) {
    %c0_i32 = arith.constant 0 : i32
    %c0_i32_0 = arith.constant 0 : i32
    return %arg0, %c0_i32 : i32, i32
  }
  func.func @transform_6(%arg0: i32) -> (i32, i32) {
    %c0_i32 = arith.constant 0 : i32
    %c0_i32_0 = arith.constant 0 : i32
    return %arg0, %c0_i32 : i32, i32
  }
}

</mosaic_0001>

<llo_original>
// kernel: tpu_custom_call.1
$region0: #{tpu_custom_call.1}
  #allocation0 [shape = 'u32[]', space=smem, size = 0x4, offset = 0x4, fixed_abs, tag = 'smem constant byte address 0x4 - core index']
  #allocation1 [shape = 'u32[144,128]{1,0:T(1,128)}', space=vmem, size = 0x12000, scoped, tag = 'internal scratch']
  %s0 = inlined_call_operand.vmem [shape: f32[64,16], index: 0, kind: input, shape index: {}]
  %s1 = inlined_call_operand.vmem [shape: f32[16,128], index: 1, kind: input, shape index: {}]
  %s2 = inlined_call_operand.vmem [shape: f32[1,128], index: 2, kind: input, shape index: {}]
  %s3 = inlined_call_operand.vmem [shape: f32[16,128], index: 3, kind: input, shape index: {}]
  %s4 = inlined_call_operand.vmem [shape: f32[1,128], index: 4, kind: input, shape index: {}]
  %s5 = inlined_call_operand.hbm [shape: f32[64,128], index: 5, kind: output, shape index: {0}]
  %s6 = inlined_call_operand.hbm [shape: f32[64,128], index: 6, kind: output, shape index: {1}]
  %7 = xla_tuple %s5, %s6
  %s8 = sld [smem:[#allocation0]]
  $region61: #{tpu_custom_call.1} parent=0
    _
  %s10 = ssub.s32 1, %s8
  %s11 = scalar_select 0, %s10, %s8
  $region1: #{tpu_custom_call.1} parent=0
    #allocation2 [shape = 'u8[32768]{0}', space=vmem, size = 0x8000, scoped, tag = 'output window, operand 0']
    #allocation3 [shape = 's32[2]{0}', space=sflag, size = 0x8, scoped, tag = 'scoped memory for tpu_custom_call.1']
    #allocation4 [shape = 'u8[32768]{0}', space=vmem, size = 0x8000, scoped, tag = 'output window, operand 1']
    #allocation5 [shape = 's32[2]{0}', space=sflag, size = 0x8, scoped, tag = 'scoped memory for tpu_custom_call.1']
    %12 = vsyncpa [#allocation3], 0
    %s13 = scalar_lea.sflag [#allocation3], 1
    %14 = vsyncpa %s13, 0
    %15 = vsyncpa [#allocation5], 0
    %s16 = scalar_lea.sflag [#allocation5], 1
    %17 = vsyncpa %s16, 0
    loop: start=0, step=1, limit=4
    $region2: #{tpu_custom_call.1} parent=1 // loop_pre_header
      _
    $region3: #{tpu_custom_call.1} parent=1 // loop_header
      %s19 = sphi 0, %s23
      %p20 = scmp.ge.s32.totalorder %s19, 4
      %s29 = sphi 0, %s31
      %s32 = sphi 0, %s29
      %s33 = sphi 0, %s32
      %s49 = sphi 0, %s33
      %s53 = sphi 0, %s53
      %s55 = sphi 0, %s53
      %s56 = sphi 0, %s55
      %s70 = sphi 0, %s56
      %s74 = sphi 0, %s74
      %s76 = sphi 0, %s74
      %s77 = sphi 0, %s76
      %s91 = sphi 0, %s77
      %s95 = sphi 0, %s95
      %s97 = sphi 0, %s95
      %s98 = sphi 0, %s97
      %s112 = sphi 0, %s98
      %s116 = sphi 0, %s116
      %s118 = sphi 0, %s116
      %s119 = sphi 0, %s118
      %s133 = sphi 0, %s119
      %s139 = sphi 0, %s141
      %s142 = sphi 0, %s139
      %s143 = sphi 0, %s142
      %s159 = sphi 0, %s143
      %s165 = sphi 0, %s167
      %s168 = sphi 0, %s165
      %s169 = sphi 0, %s168
      %s185 = sphi 0, %s169
    $region4: #{tpu_custom_call.1} parent=1 // loop_header_branch
      %22 = sbr.rel (%p20) target = $region8
    $region5: #{tpu_custom_call.1} parent=1 // loop_body
      %s24 = ssub.s32 %s19, 1
      %s25 = ssub.s32 %s19, 2
      %s26 = sadd.s32 %s19, 1
      %s27 = ssub.s32 %s19, %s26
      %p28 = scmp.eq.s32.totalorder %s27, 0
      %s30 = sadd.s32 %s29, 1
      %s31 = scalar_select %p28, %s29, %s30
      %p34 = pneg %p28
      %p35 = scmp.eq.s32.totalorder %s19, 1
      %p36 = por %p34, %p35
      %p37 = scmp.ne.s32.totalorder %s29, %s32
      %p38 = scmp.eq.s32.totalorder %s19, 0
      %p39 = por %p37, %p38
      %p40 = scmp.ne.s32.totalorder %s29, %s32
      %p41 = scmp.eq.s32.totalorder %s24, 1
      %p42 = por %p40, %p41
      %p43 = scmp.ne.s32.totalorder %s32, %s33
      %p44 = scmp.eq.s32.totalorder %s24, 0
      %p45 = por %p43, %p44
      %p46 = scmp.ne.s32.totalorder %s32, %s33
      %p47 = scmp.eq.s32.totalorder %s25, 1
      %p48 = por %p46, %p47
      %p50 = scmp.ne.s32.totalorder %s33, %s49
      %p51 = scmp.eq.s32.totalorder %s25, 0
      %p52 = por %p50, %p51
      %s54 = sadd.s32 %s53, 1
      %p57 = scmp.eq.s32.totalorder %s19, 1
      %p58 = scmp.ne.s32.totalorder %s53, %s55
      %p59 = scmp.eq.s32.totalorder %s19, 0
      %p60 = por %p58, %p59
      %p61 = scmp.ne.s32.totalorder %s53, %s55
      %p62 = scmp.eq.s32.totalorder %s24, 1
      %p63 = por %p61, %p62
      %p64 = scmp.ne.s32.totalorder %s55, %s56
      %p65 = scmp.eq.s32.totalorder %s24, 0
      %p66 = por %p64, %p65
      %p67 = scmp.ne.s32.totalorder %s55, %s56
      %p68 = scmp.eq.s32.totalorder %s25, 1
      %p69 = por %p67, %p68
      %p71 = scmp.ne.s32.totalorder %s56, %s70
      %p72 = scmp.eq.s32.totalorder %s25, 0
      %p73 = por %p71, %p72
      %s75 = sadd.s32 %s74, 1
      %p78 = scmp.eq.s32.totalorder %s19, 1
      %p79 = scmp.ne.s32.totalorder %s74, %s76
      %p80 = scmp.eq.s32.totalorder %s19, 0
      %p81 = por %p79, %p80
      %p82 = scmp.ne.s32.totalorder %s74, %s76
      %p83 = scmp.eq.s32.totalorder %s24, 1
      %p84 = por %p82, %p83
      %p85 = scmp.ne.s32.totalorder %s76, %s77
      %p86 = scmp.eq.s32.totalorder %s24, 0
      %p87 = por %p85, %p86
      %p88 = scmp.ne.s32.totalorder %s76, %s77
      %p89 = scmp.eq.s32.totalorder %s25, 1
      %p90 = por %p88, %p89
      %p92 = scmp.ne.s32.totalorder %s77, %s91
      %p93 = scmp.eq.s32.totalorder %s25, 0
      %p94 = por %p92, %p93
      %s96 = sadd.s32 %s95, 1
      %p99 = scmp.eq.s32.totalorder %s19, 1
      %p100 = scmp.ne.s32.totalorder %s95, %s97
      %p101 = scmp.eq.s32.totalorder %s19, 0
      %p102 = por %p100, %p101
      %p103 = scmp.ne.s32.totalorder %s95, %s97
      %p104 = scmp.eq.s32.totalorder %s24, 1
      %p105 = por %p103, %p104
      %p106 = scmp.ne.s32.totalorder %s97, %s98
      %p107 = scmp.eq.s32.totalorder %s24, 0
      %p108 = por %p106, %p107
      %p109 = scmp.ne.s32.totalorder %s97, %s98
      %p110 = scmp.eq.s32.totalorder %s25, 1
      %p111 = por %p109, %p110
      %p113 = scmp.ne.s32.totalorder %s98, %s112
      %p114 = scmp.eq.s32.totalorder %s25, 0
      %p115 = por %p113, %p114
      %s117 = sadd.s32 %s116, 1
      %p120 = scmp.eq.s32.totalorder %s19, 1
      %p121 = scmp.ne.s32.totalorder %s116, %s118
      %p122 = scmp.eq.s32.totalorder %s19, 0
      %p123 = por %p121, %p122
      %p124 = scmp.ne.s32.totalorder %s116, %s118
      %p125 = scmp.eq.s32.totalorder %s24, 1
      %p126 = por %p124, %p125
      %p127 = scmp.ne.s32.totalorder %s118, %s119
      %p128 = scmp.eq.s32.totalorder %s24, 0
      %p129 = por %p127, %p128
      %p130 = scmp.ne.s32.totalorder %s118, %s119
      %p131 = scmp.eq.s32.totalorder %s25, 1
      %p132 = por %p130, %p131
      %p134 = scmp.ne.s32.totalorder %s119, %s133
      %p135 = scmp.eq.s32.totalorder %s25, 0
      %p136 = por %p134, %p135
      %s137 = ssub.s32 %s19, %s26
      %p138 = scmp.eq.s32.totalorder %s137, 0
      %s140 = sadd.s32 %s139, 1
      %s141 = scalar_select %p138, %s139, %s140
      %p144 = pneg %p138
      %p145 = scmp.eq.s32.totalorder %s19, 1
      %p146 = por %p144, %p145
      %p147 = scmp.ne.s32.totalorder %s139, %s142
      %p148 = scmp.eq.s32.totalorder %s19, 0
      %p149 = por %p147, %p148
      %p150 = scmp.ne.s32.totalorder %s139, %s142
      %p151 = scmp.eq.s32.totalorder %s24, 1
      %p152 = por %p150, %p151
      %p153 = scmp.ne.s32.totalorder %s142, %s143
      %p154 = scmp.eq.s32.totalorder %s24, 0
      %p155 = por %p153, %p154
      %p156 = scmp.ne.s32.totalorder %s142, %s143
      %p157 = scmp.eq.s32.totalorder %s25, 1
      %p158 = por %p156, %p157
      %p160 = scmp.ne.s32.totalorder %s143, %s159
      %p161 = scmp.eq.s32.totalorder %s25, 0
      %p162 = por %p160, %p161
      %s163 = ssub.s32 %s19, %s26
      %p164 = scmp.eq.s32.totalorder %s163, 0
      %s166 = sadd.s32 %s165, 1
      %s167 = scalar_select %p164, %s165, %s166
      %p170 = pneg %p164
      %p171 = scmp.eq.s32.totalorder %s19, 1
      %p172 = por %p170, %p171
      %p173 = scmp.ne.s32.totalorder %s165, %s168
      %p174 = scmp.eq.s32.totalorder %s19, 0
      %p175 = por %p173, %p174
      %p176 = scmp.ne.s32.totalorder %s165, %s168
      %p177 = scmp.eq.s32.totalorder %s24, 1
      %p178 = por %p176, %p177
      %p179 = scmp.ne.s32.totalorder %s168, %s169
      %p180 = scmp.eq.s32.totalorder %s24, 0
      %p181 = por %p179, %p180
      %p182 = scmp.ne.s32.totalorder %s168, %s169
      %p183 = scmp.eq.s32.totalorder %s25, 1
      %p184 = por %p182, %p183
      %p186 = scmp.ne.s32.totalorder %s169, %s185
      %p187 = scmp.eq.s32.totalorder %s25, 0
      %p188 = por %p186, %p187
      %p189 = scmp.le.s32.totalorder 1, %s19
      %p190 = scmp.lt.s32.totalorder %s19, 3
      %p191 = pnand %p189, %p190
      %p192 = pneg %p191
      // Predicated region
      $region9: #{tpu_custom_call.1} parent=5 // pred_check
        _
      $region10: #{tpu_custom_call.1} parent=5 // pred_check_branch
        %194 = sbr.rel (%p191) target = $region12
      $region11: #{tpu_custom_call.1} parent=5 // pred_region
        %s195 = ssub.s32 %s19, 1
        // Predicated region
        $region13: #{tpu_custom_call.1} parent=11 // pred_check
          %p196 = pneg %p66
        $region14: #{tpu_custom_call.1} parent=11 // pred_check_branch
          %198 = sbr.rel (%p196) target = $region16
        $region15: #{tpu_custom_call.1} parent=11 // pred_region
          _
        $region16: #{tpu_custom_call.1} parent=11 // pred_fallthru
          _
        // Predicated region
        $region17: #{tpu_custom_call.1} parent=11 // pred_check
          %p199 = pneg %p87
        $region18: #{tpu_custom_call.1} parent=11 // pred_check_branch
          %201 = sbr.rel (%p199) target = $region20
        $region19: #{tpu_custom_call.1} parent=11 // pred_region
          _
        $region20: #{tpu_custom_call.1} parent=11 // pred_fallthru
          _
        // Predicated region
        $region21: #{tpu_custom_call.1} parent=11 // pred_check
          %p202 = pneg %p108
        $region22: #{tpu_custom_call.1} parent=11 // pred_check_branch
          %204 = sbr.rel (%p202) target = $region24
        $region23: #{tpu_custom_call.1} parent=11 // pred_region
          _
        $region24: #{tpu_custom_call.1} parent=11 // pred_fallthru
          _
        // Predicated region
        $region25: #{tpu_custom_call.1} parent=11 // pred_check
          %p205 = pneg %p129
        $region26: #{tpu_custom_call.1} parent=11 // pred_check_branch
          %207 = sbr.rel (%p205) target = $region28
        $region27: #{tpu_custom_call.1} parent=11 // pred_region
          _
        $region28: #{tpu_custom_call.1} parent=11 // pred_fallthru
          _
      $region12: #{tpu_custom_call.1} parent=5 // pred_fallthru
        _
      %p208 = scmp.lt.s32.totalorder %s19, 2
      // Predicated region
      $region29: #{tpu_custom_call.1} parent=5 // pred_check
        %p209 = pneg %p208
      $region30: #{tpu_custom_call.1} parent=5 // pred_check_branch
        %211 = sbr.rel (%p209) target = $region32
      $region31: #{tpu_custom_call.1} parent=5 // pred_region
        // Predicated region
        $region33: #{tpu_custom_call.1} parent=31 // pred_check
          %p212 = pneg %p39
        $region34: #{tpu_custom_call.1} parent=31 // pred_check_branch
          %214 = sbr.rel (%p212) target = $region36
        $region35: #{tpu_custom_call.1} parent=31 // pred_region
          %s215 = smul.u32 4, %s19
          %p216 = scmp.lt.s32.totalorder %s215, 7
          %s217 = scalar_select %p216, %s215, 7
          %s218 = smul.addr %s217, 8
          %s219 = scalar_lea.vmem %s0, %s218
          %s220 = smul.u32 4, %s19
        $region36: #{tpu_custom_call.1} parent=31 // pred_fallthru
          _
      $region32: #{tpu_custom_call.1} parent=5 // pred_fallthru
        _
      %p221 = scmp.le.s32.totalorder 1, %s19
      %p222 = scmp.lt.s32.totalorder %s19, 3
      %p223 = pnand %p221, %p222
      %p224 = pneg %p223
      // Predicated region
      $region37: #{tpu_custom_call.1} parent=5 // pred_check
        _
      $region38: #{tpu_custom_call.1} parent=5 // pred_check_branch
        %226 = sbr.rel (%p223) target = $region40
      $region39: #{tpu_custom_call.1} parent=5 // pred_region
        %s227 = ssub.s32 %s19, 1
        %s228 = smul.u32 4, %s24
        %p229 = scmp.lt.s32.totalorder %s228, 7
        %s230 = scalar_select %p229, %s228, 7
        %s231 = smul.addr %s230, 8
        %s232 = scalar_lea.vmem %s0, %s231
        %p233 = pneg %p45
        %p234 = pneg %p42
        %p235 = pneg %p66
        %p236 = pneg %p63
        %p237 = pneg %p87
        %p238 = pneg %p84
        %p239 = pneg %p108
        %p240 = pneg %p105
        %p241 = pneg %p129
        %p242 = pneg %p126
        %p243 = pneg %p155
        %p244 = pneg %p152
        %s245 = sand.u32 %s142, 1
        %s246 = scalar_lea.sflag [#allocation3], %s245
        %s247 = sand.u32 %s142, 1
        %s248 = smul.addr %s247, 32
        %s249 = scalar_lea.vmem [#allocation2], %s248
        %p250 = pneg %p181
        %p251 = pneg %p178
        %s252 = sand.u32 %s168, 1
        %s253 = scalar_lea.sflag [#allocation5], %s252
        %s254 = sand.u32 %s168, 1
        %s255 = smul.addr %s254, 32
        %s256 = scalar_lea.vmem [#allocation4], %s255
        %s257 = smul.u32 4, %s24
        %p258 = scmp.lt.s32.totalorder %s257, 7
        %s259 = scalar_select %p258, %s257, 7
        %s260 = smul.addr %s259, 8
        %s261 = scalar_lea.vmem %s0, %s260
        %s262 = smul.u32 4, %s24
        %s263 = smul.u32 4, %s24
        %s264 = smul.u32 4, %s24
        %v265 = vld [vmem:[%s261] sm:$0xff]
        %v266 = vld [vmem:[%s261 + $0x8] sm:$0xff]
        %v267 = vld [vmem:[%s261 + $0x10] sm:$0xff]
        %v268 = vld [vmem:[%s261 + $0x18] sm:$0xff]
        %v269 = vld [vmem:[%s1] sm:$0xff]
        %v270 = vld [vmem:[%s1 + $0x8] sm:$0xff]
        %v271 = vld [vmem:[%s2] sm:$0x1]
        %v273 = vlaneseq
        %v274 = vshrl.u32 %v273, 7
        %v275 = vsub.s32 0, %v274
        %v276 = vrot.slane %v271, %v275
        %vm278 = vcmask 130048
        %v280 = vsel %vm278, %v265, 0
        %v283 = vsel %vm278, %v266, 0
        %v286 = vsel %vm278, %v267, 0
        %v289 = vsel %vm278, %v268, 0
        %291 = vmatprep.subr.mxu0 0.0
        %292 = vmatpush1.msra.mxu0 0.0
        %293 = vmatprep.subr.mxu0 0.0
        %294 = vmatpush1.msra.mxu0 0.0
        %295 = vmatprep.subr.mxu0 0.0
        %296 = vmatpush1.msra.mxu0 0.0
        %297 = vmatprep.subr.mxu0 0.0
        %298 = vmatpush1.msra.mxu0 0.0
        %299 = vmatprep.subr.mxu0 0.0
        %300 = vmatpush1.msra.mxu0 0.0
        %301 = vmatprep.subr.mxu0 0.0
        %302 = vmatpush1.msra.mxu0 0.0
        %303 = vmatprep.subr.mxu0 0.0
        %304 = vmatpush1.msra.mxu0 0.0
        %305 = vmatprep.subr.mxu0 0.0
        %306 = vmatpush1.msra.mxu0 0.0
        %307 = vmatprep.subr.mxu0 0.0
        %308 = vmatpush1.msra.mxu0 0.0
        %309 = vmatprep.subr.mxu0 0.0
        %310 = vmatpush1.msra.mxu0 0.0
        %311 = vmatprep.subr.mxu0 0.0
        %312 = vmatpush1.msra.mxu0 0.0
        %313 = vmatprep.subr.mxu0 0.0
        %314 = vmatpush1.msra.mxu0 0.0
        %315 = vmatprep.subr.mxu0 0.0
        %316 = vmatpush1.msra.mxu0 0.0
        %317 = vmatprep.subr.mxu0 0.0
        %318 = vmatpush1.msra.mxu0 0.0
        %319 = vmatprep.subr.mxu0 0.0
        %320 = vmatpush1.msra.mxu0 %v270
        %321 = vmatprep.subr.mxu0 0.0
        %322 = vmatpush1.msra.mxu0 %v269
        %323 = vmatprep.subr.mxu0 0.0
        %324 = vmatpush2.msra.mxu0 0.0
        %325 = vmatprep.subr.mxu0 0.0
        %326 = vmatpush2.msra.mxu0 0.0
        %327 = vmatprep.subr.mxu0 0.0
        %328 = vmatpush2.msra.mxu0 0.0
        %329 = vmatprep.subr.mxu0 0.0
        %330 = vmatpush2.msra.mxu0 0.0
        %331 = vmatprep.subr.mxu0 0.0
        %332 = vmatpush2.msra.mxu0 0.0
        %333 = vmatprep.subr.mxu0 0.0
        %334 = vmatpush2.msra.mxu0 0.0
        %335 = vmatprep.subr.mxu0 0.0
        %336 = vmatpush2.msra.mxu0 0.0
        %337 = vmatprep.subr.mxu0 0.0
        %338 = vmatpush2.msra.mxu0 0.0
        %339 = vmatprep.subr.mxu0 0.0
        %340 = vmatpush2.msra.mxu0 0.0
        %341 = vmatprep.subr.mxu0 0.0
        %342 = vmatpush2.msra.mxu0 0.0
        %343 = vmatprep.subr.mxu0 0.0
        %344 = vmatpush2.msra.mxu0 0.0
        %345 = vmatprep.subr.mxu0 0.0
        %346 = vmatpush2.msra.mxu0 0.0
        %347 = vmatprep.subr.mxu0 0.0
        %348 = vmatpush2.msra.mxu0 0.0
        %349 = vmatprep.subr.mxu0 0.0
        %350 = vmatpush2.msra.mxu0 0.0
        %351 = vmatprep.subr.mxu0 0.0
        %352 = vmatpush2.msra.mxu0 0.0
        %353 = vmatprep.subr.mxu0 0.0
        %354 = vmatpush2.msra.mxu0 0.0
        %355 = vmatprep.mubr.f32.mxu0 0.0
        %356 = vmatmul.mubr.f32.gmra.mxu0 %v280
        %v357 = vpop.f32.mrf.mxu0
        %v358 = vadd.f32 %v276, %v357
        %v359 = vpop.f32.mrf.mxu0
        %360 = vmatprep.mubr.f32.mxu0 0.0
        %361 = vmatmul.mubr.f32.gmra.mxu0 %v283
        %v362 = vpop.f32.mrf.mxu0
        %v363 = vadd.f32 %v276, %v362
        %v364 = vpop.f32.mrf.mxu0
        %365 = vmatprep.mubr.f32.mxu0 0.0
        %366 = vmatmul.mubr.f32.gmra.mxu0 %v286
        %v367 = vpop.f32.mrf.mxu0
        %v368 = vadd.f32 %v276, %v367
        %v369 = vpop.f32.mrf.mxu0
        %370 = vmatprep.mubr.f32.mxu0 0.0
        %371 = vmatmul.mubr.f32.gmra.mxu0 %v289
        %v372 = vpop.f32.mrf.mxu0
        %v373 = vadd.f32 %v276, %v372
        %v374 = vpop.f32.mrf.mxu0
        %375 = vdwg.mxu0
        %376 = vst [vmem:[%s249] sm:$0xff] %v358
        %377 = vst [vmem:[%s249 + $0x8] sm:$0xff] %v363
        %378 = vst [vmem:[%s249 + $0x10] sm:$0xff] %v368
        %379 = vst [vmem:[%s249 + $0x18] sm:$0xff] %v373
        %v380 = vld [vmem:[%s3] sm:$0xff]
        %v381 = vld [vmem:[%s3 + $0x8] sm:$0xff]
        %v382 = vld [vmem:[%s4] sm:$0x1]
        %v384 = vlaneseq
        %v385 = vshrl.u32 %v384, 7
        %v386 = vsub.s32 0, %v385
        %v387 = vrot.slane %v382, %v386
        %389 = vmatprep.subr.mxu0 0.0
        %390 = vmatpush1.msra.mxu0 0.0
        %391 = vmatprep.subr.mxu0 0.0
        %392 = vmatpush1.msra.mxu0 0.0
        %393 = vmatprep.subr.mxu0 0.0
        %394 = vmatpush1.msra.mxu0 0.0
        %395 = vmatprep.subr.mxu0 0.0
        %396 = vmatpush1.msra.mxu0 0.0
        %397 = vmatprep.subr.mxu0 0.0
        %398 = vmatpush1.msra.mxu0 0.0
        %399 = vmatprep.subr.mxu0 0.0
        %400 = vmatpush1.msra.mxu0 0.0
        %401 = vmatprep.subr.mxu0 0.0
        %402 = vmatpush1.msra.mxu0 0.0
        %403 = vmatprep.subr.mxu0 0.0
        %404 = vmatpush1.msra.mxu0 0.0
        %405 = vmatprep.subr.mxu0 0.0
        %406 = vmatpush1.msra.mxu0 0.0
        %407 = vmatprep.subr.mxu0 0.0
        %408 = vmatpush1.msra.mxu0 0.0
        %409 = vmatprep.subr.mxu0 0.0
        %410 = vmatpush1.msra.mxu0 0.0
        %411 = vmatprep.subr.mxu0 0.0
        %412 = vmatpush1.msra.mxu0 0.0
        %413 = vmatprep.subr.mxu0 0.0
        %414 = vmatpush1.msra.mxu0 0.0
        %415 = vmatprep.subr.mxu0 0.0
        %416 = vmatpush1.msra.mxu0 0.0
        %417 = vmatprep.subr.mxu0 0.0
        %418 = vmatpush1.msra.mxu0 %v381
        %419 = vmatprep.subr.mxu0 0.0
        %420 = vmatpush1.msra.mxu0 %v380
        %421 = vmatprep.subr.mxu0 0.0
        %422 = vmatpush2.msra.mxu0 0.0
        %423 = vmatprep.subr.mxu0 0.0
        %424 = vmatpush2.msra.mxu0 0.0
        %425 = vmatprep.subr.mxu0 0.0
        %426 = vmatpush2.msra.mxu0 0.0
        %427 = vmatprep.subr.mxu0 0.0
        %428 = vmatpush2.msra.mxu0 0.0
        %429 = vmatprep.subr.mxu0 0.0
        %430 = vmatpush2.msra.mxu0 0.0
        %431 = vmatprep.subr.mxu0 0.0
        %432 = vmatpush2.msra.mxu0 0.0
        %433 = vmatprep.subr.mxu0 0.0
        %434 = vmatpush2.msra.mxu0 0.0
        %435 = vmatprep.subr.mxu0 0.0
        %436 = vmatpush2.msra.mxu0 0.0
        %437 = vmatprep.subr.mxu0 0.0
        %438 = vmatpush2.msra.mxu0 0.0
        %439 = vmatprep.subr.mxu0 0.0
        %440 = vmatpush2.msra.mxu0 0.0
        %441 = vmatprep.subr.mxu0 0.0
        %442 = vmatpush2.msra.mxu0 0.0
        %443 = vmatprep.subr.mxu0 0.0
        %444 = vmatpush2.msra.mxu0 0.0
        %445 = vmatprep.subr.mxu0 0.0
        %446 = vmatpush2.msra.mxu0 0.0
        %447 = vmatprep.subr.mxu0 0.0
        %448 = vmatpush2.msra.mxu0 0.0
        %449 = vmatprep.subr.mxu0 0.0
        %450 = vmatpush2.msra.mxu0 0.0
        %451 = vmatprep.subr.mxu0 0.0
        %452 = vmatpush2.msra.mxu0 0.0
        %453 = vmatprep.mubr.f32.mxu0 0.0
        %454 = vmatmul.mubr.f32.gmra.mxu0 %v280
        %v455 = vpop.f32.mrf.mxu0
        %v456 = vadd.f32 %v387, %v455
        %v457 = vpop.f32.mrf.mxu0
        %458 = vmatprep.mubr.f32.mxu0 0.0
        %459 = vmatmul.mubr.f32.gmra.mxu0 %v283
        %v460 = vpop.f32.mrf.mxu0
        %v461 = vadd.f32 %v387, %v460
        %v462 = vpop.f32.mrf.mxu0
        %463 = vmatprep.mubr.f32.mxu0 0.0
        %464 = vmatmul.mubr.f32.gmra.mxu0 %v286
        %v465 = vpop.f32.mrf.mxu0
        %v466 = vadd.f32 %v387, %v465
        %v467 = vpop.f32.mrf.mxu0
        %468 = vmatprep.mubr.f32.mxu0 0.0
        %469 = vmatmul.mubr.f32.gmra.mxu0 %v289
        %v470 = vpop.f32.mrf.mxu0
        %v471 = vadd.f32 %v387, %v470
        %v472 = vpop.f32.mrf.mxu0
        %473 = vdwg.mxu0
        %474 = vst [vmem:[%s256] sm:$0xff] %v456
        %475 = vst [vmem:[%s256 + $0x8] sm:$0xff] %v461
        %476 = vst [vmem:[%s256 + $0x10] sm:$0xff] %v466
        %477 = vst [vmem:[%s256 + $0x18] sm:$0xff] %v471
        %s478 = sand.u32 %s142, 1
        %s479 = scalar_lea.sflag [#allocation3], %s478
        %s480 = sand.u32 %s142, 1
        %s481 = smul.addr %s480, 32
        %s482 = scalar_lea.vmem [#allocation2], %s481
        %s483 = sand.u32 %s168, 1
        %s484 = scalar_lea.sflag [#allocation5], %s483
        %s485 = sand.u32 %s168, 1
        %s486 = smul.addr %s485, 32
        %s487 = scalar_lea.vmem [#allocation4], %s486
        // Predicated region
        $region41: #{tpu_custom_call.1} parent=39 // pred_check
          %p488 = pneg %p152
        $region42: #{tpu_custom_call.1} parent=39 // pred_check_branch
          %490 = sbr.rel (%p488) target = $region44
        $region43: #{tpu_custom_call.1} parent=39 // pred_region
          %s491 = smul.u32 4, %s24
          %s493 = ssub.s32 512, 512
          %494 = vsyncadd %s479, %s493
          %s495 = smul.addr %s491, 128
          %s496 = scalar_lea.hbm %s5, %s495
          %s497 = sshll.u32 %s482, 4
          %s498 = int_to_ptr.vmem [resolvable:$true] %s497
          %503 = dma.vmem_to_hbm [thread:$0]  %s498, 512, %s496, %s479, 128, 128, 8
        $region44: #{tpu_custom_call.1} parent=39 // pred_fallthru
          _
        // Predicated region
        $region45: #{tpu_custom_call.1} parent=39 // pred_check
          %p504 = pneg %p178
        $region46: #{tpu_custom_call.1} parent=39 // pred_check_branch
          %506 = sbr.rel (%p504) target = $region48
        $region47: #{tpu_custom_call.1} parent=39 // pred_region
          %s507 = smul.u32 4, %s24
          %s509 = ssub.s32 512, 512
          %510 = vsyncadd %s484, %s509
          %s511 = smul.addr %s507, 128
          %s512 = scalar_lea.hbm %s6, %s511
          %s513 = sshll.u32 %s487, 4
          %s514 = int_to_ptr.vmem [resolvable:$true] %s513
          %519 = dma.vmem_to_hbm [thread:$0]  %s514, 512, %s512, %s484, 128, 128, 8
        $region48: #{tpu_custom_call.1} parent=39 // pred_fallthru
          _
      $region40: #{tpu_custom_call.1} parent=5 // pred_fallthru
        _
      %p520 = scmp.le.s32.totalorder 2, %s19
      // Predicated region
      $region49: #{tpu_custom_call.1} parent=5 // pred_check
        %p521 = pneg %p520
      $region50: #{tpu_custom_call.1} parent=5 // pred_check_branch
        %523 = sbr.rel (%p521) target = $region52
      $region51: #{tpu_custom_call.1} parent=5 // pred_region
        %s524 = ssub.s32 %s19, 2
        // Predicated region
        $region53: #{tpu_custom_call.1} parent=51 // pred_check
          %p525 = pneg %p158
        $region54: #{tpu_custom_call.1} parent=51 // pred_check_branch
          %527 = sbr.rel (%p525) target = $region56
        $region55: #{tpu_custom_call.1} parent=51 // pred_region
          %s528 = sand.u32 %s143, 1
          %s529 = scalar_lea.sflag [#allocation3], %s528
          %s530 = sand.u32 %s143, 1
          %s531 = smul.addr %s530, 32
          %s532 = scalar_lea.vmem [#allocation2], %s531
          %533 = dma.done %s529, 512
        $region56: #{tpu_custom_call.1} parent=51 // pred_fallthru
          _
        // Predicated region
        $region57: #{tpu_custom_call.1} parent=51 // pred_check
          %p534 = pneg %p184
        $region58: #{tpu_custom_call.1} parent=51 // pred_check_branch
          %536 = sbr.rel (%p534) target = $region60
        $region59: #{tpu_custom_call.1} parent=51 // pred_region
          %s537 = sand.u32 %s169, 1
          %s538 = scalar_lea.sflag [#allocation5], %s537
          %s539 = sand.u32 %s169, 1
          %s540 = smul.addr %s539, 32
          %s541 = scalar_lea.vmem [#allocation4], %s540
          %542 = dma.done %s538, 512
        $region60: #{tpu_custom_call.1} parent=51 // pred_fallthru
          _
      $region52: #{tpu_custom_call.1} parent=5 // pred_fallthru
        _
    $region6: #{tpu_custom_call.1} parent=1 // loop_footer
      %s23 = sadd.s32 1, %s19
    $region7: #{tpu_custom_call.1} parent=1 // loop_footer_branch
      %18 = sbr.rel target = $region3
    $region8: #{tpu_custom_call.1} parent=1 // loop_exit
      _
    %543 = vsyncpa [#allocation3], 1
    %s544 = scalar_lea.sflag [#allocation3], 1
    %545 = vsyncpa %s544, 1
    %546 = vsyncpa [#allocation5], 1
    %s547 = scalar_lea.sflag [#allocation5], 1
    %548 = vsyncpa %s547, 1

</llo_original>
